<compile_context>
chip_gen: v5e
topology: v5e:2x2
jax: 0.10.0
libtpu: 0.0.40
codegen_flags: <defaults>
</compile_context>

<pallas_src>
import functools

import jax
import jax.numpy as jnp
from jax.experimental import pallas as pl
from jax.experimental.pallas import tpu as pltpu

# Layer sizes from the PyTorch module definition.
INPUT_SIZE = 25
HIDDEN_SIZES = [72, 112, 71, 59, 35, 47, 84]
OUTPUT_SIZE = 3  # small output size for the synthetic model

LAYER_DIMS = [INPUT_SIZE] + HIDDEN_SIZES + [OUTPUT_SIZE]  # 9 dims -> 8 linears
NUM_LAYERS = len(LAYER_DIMS) - 1  # 8

LANE = 128  # hidden / output feature dims are zero-padded to one full lane width


def _round_up(x, m):
    return (x + m - 1) // m * m


def _cdiv(a, b):
    return -(-a // b)


def _mlp_kernel(x_ref, w0_ref, w_ref, b_ref, o_ref):
    """One batch tile through all 8 Linear(+ReLU) layers.

    x_ref  : (TB, 25)        f32   raw input rows (no host-side lane padding)
    w0_ref : (25, 128)       bf16  layer-0 weight, output dim zero-padded to 128
    w_ref  : (7, 128, 128)   bf16  layers 1..7 weights, zero-padded to (128, 128)
    b_ref  : (8, 128)        f32   per-layer biases, zero-padded to 128 lanes
    o_ref  : (TB, 128)       bf16  lane-dense output (first OUTPUT_SIZE lanes valid)

    Zero-padded weight rows/cols and bias lanes keep padded activation lanes exactly
    zero through bias-add/ReLU, so results on the real lanes are unchanged.
    """
    # Layer 0: single bf16 cast of the raw f32 input, K=25 contraction on the MXU.
    h = jnp.dot(x_ref[...].astype(jnp.bfloat16), w0_ref[...],
                preferred_element_type=jnp.float32)
    h = h + b_ref[pl.ds(0, 1), :]
    h = jnp.maximum(h, 0.0)

    # Layers 1..7 (last one has no ReLU): static 7-iteration unroll.
    for li in range(1, NUM_LAYERS):
        w = w_ref[li - 1]                               # (128, 128) bf16 static view
        h = jnp.dot(h.astype(jnp.bfloat16), w,
                    preferred_element_type=jnp.float32)
        h = h + b_ref[pl.ds(li, 1), :]
        if li != NUM_LAYERS - 1:
            h = jnp.maximum(h, 0.0)

    o_ref[...] = h.astype(o_ref.dtype)                  # bf16 writeback (half HBM out)


def _choose_tiling(batch, block_batch):
    """Pick (tile_rows, padded_batch): multiple of 16 rows, >=2 grid steps when the
    batch allows it (v7x has 2 TensorCores), minimal tail padding for ragged sizes."""
    b16 = _round_up(batch, 16)
    n_tiles = max(_cdiv(b16, block_batch), 2 if b16 >= 32 else 1)
    tb = _round_up(_cdiv(b16, n_tiles), 16)
    n_tiles = _cdiv(b16, tb)
    return tb, n_tiles * tb


@functools.partial(jax.jit, static_argnames=("block_batch",))
def naive_nn_forward(x, w0, w_rest, b_packed, *, block_batch=1024):
    """x: (batch, 25) f32. Returns (batch, OUTPUT_SIZE) f32."""
    batch = x.shape[0]
    tb, batch_pad = _choose_tiling(batch, block_batch)

    # Only pad batch rows when needed; no 128-lane input slab round-trip via HBM.
    xp = x if batch_pad == batch else jnp.pad(x, ((0, batch_pad - batch), (0, 0)))

    grid = (batch_pad // tb,)

    flops_per_row = 2 * sum(LAYER_DIMS[i] * LAYER_DIMS[i + 1]
                            for i in range(NUM_LAYERS))
    cost = pl.CostEstimate(
        flops=batch_pad * flops_per_row,
        transcendentals=0,
        bytes_accessed=(batch_pad * INPUT_SIZE * 4            # x (f32, 25 lanes)
                        + batch_pad * LANE * 2                # out (bf16, 128 lanes)
                        + INPUT_SIZE * LANE * 2               # w0 (bf16)
                        + (NUM_LAYERS - 1) * LANE * LANE * 2  # packed weights (bf16)
                        + NUM_LAYERS * LANE * 4),             # packed biases (f32)
    )

    out = pl.pallas_call(
        _mlp_kernel,
        out_shape=jax.ShapeDtypeStruct((batch_pad, LANE), jnp.bfloat16),
        grid=grid,
        in_specs=[
            pl.BlockSpec((tb, INPUT_SIZE), lambda i: (i, 0)),                # x tile
            pl.BlockSpec((INPUT_SIZE, LANE), lambda i: (0, 0)),              # w0 resident
            pl.BlockSpec((NUM_LAYERS - 1, LANE, LANE), lambda i: (0, 0, 0)),  # w1..7 resident
            pl.BlockSpec((NUM_LAYERS, LANE), lambda i: (0, 0)),              # biases resident
        ],
        out_specs=pl.BlockSpec((tb, LANE), lambda i: (i, 0)),
        compiler_params=pltpu.CompilerParams(
            dimension_semantics=("parallel",),
            vmem_limit_bytes=32 * 1024 * 1024,  # safe on v5e/v6e/v7x; usage is ~2 MiB
        ),
        cost_estimate=cost,
    )(xp, w0, w_rest, b_packed)

    return out[:batch, :OUTPUT_SIZE].astype(jnp.float32)


def init_params(key):
    """Deterministic init mimicking PyTorch Linear's U(-1/sqrt(fan_in), ...)."""
    params = []
    for li in range(NUM_LAYERS):
        fan_in = LAYER_DIMS[li]
        fan_out = LAYER_DIMS[li + 1]
        key, kw, kb = jax.random.split(key, 3)
        bound = 1.0 / (fan_in ** 0.5)
        w = jax.random.uniform(kw, (fan_in, fan_out), jnp.float32, -bound, bound)
        b = jax.random.uniform(kb, (fan_out,), jnp.float32, -bound, bound)
        params.append((w, b))
    return params


def pack_params(params):
    """Pack per-layer (W, b):
       layer 0 weight -> (25, 128) bf16 (output dim zero-padded),
       layers 1..7    -> one (7, 128, 128) bf16 slab,
       all biases     -> one (8, 128) f32 tile."""
    (w0_raw, b0) = params[0]
    w0 = jnp.pad(w0_raw, ((0, 0), (0, LANE - w0_raw.shape[1]))).astype(jnp.bfloat16)
    b_rows = [jnp.pad(b0, (0, LANE - b0.shape[0])).astype(jnp.float32)]
    w_blocks = []
    for w, b in params[1:]:
        k, n = w.shape
        w_blocks.append(jnp.pad(w, ((0, LANE - k), (0, LANE - n))).astype(jnp.bfloat16))
        b_rows.append(jnp.pad(b, (0, LANE - n)).astype(jnp.float32))
    w_rest = jnp.stack(w_blocks, axis=0)     # (7, 128, 128) bf16
    b_packed = jnp.stack(b_rows, axis=0)     # (8, 128) f32
    return w0, w_rest, b_packed


def reference_forward(x, params):
    """Pure-JAX reference mirroring the kernel numerics: bf16 MXU operands,
    f32 accumulation for bias-add/ReLU, bf16 final output."""
    h = x.astype(jnp.float32)
    for li, (w, b) in enumerate(params):
        h = jnp.dot(h.astype(jnp.bfloat16), w.astype(jnp.bfloat16),
                    preferred_element_type=jnp.float32) + b
        if li != NUM_LAYERS - 1:
            h = jnp.maximum(h, 0.0)
    return h.astype(jnp.bfloat16).astype(jnp.float32)


if __name__ == "__main__":
    key = jax.random.PRNGKey(0)
    key, kx = jax.random.split(key)

    batch = 8
    x = jax.random.normal(kx, (batch, INPUT_SIZE), jnp.float32)
    params = init_params(key)
    w0, w_rest, b_packed = pack_params(params)

    out = naive_nn_forward(x, w0, w_rest, b_packed)
    out = jax.block_until_ready(out)

    ref = reference_forward(x, params)
    assert out.shape == (batch, OUTPUT_SIZE), out.shape
    assert jnp.allclose(out, ref, atol=2e-2, rtol=2e-2), "mismatch vs reference"

    print("KERNEL_OK")
</pallas_src>

<mosaic_0001>
module attributes {stable_mosaic.version = 11 : i64} {
  func.func @_mlp_kernel(%arg0: i32, %arg1: memref<16x25xf32, #tpu.memory_space<vmem>>, %arg2: memref<25x128xbf16, #tpu.memory_space<vmem>>, %arg3: memref<7x128x128xbf16, #tpu.memory_space<vmem>>, %arg4: memref<8x128xf32, #tpu.memory_space<vmem>>, %arg5: memref<16x128xbf16, #tpu.memory_space<vmem>>) attributes {dimension_semantics = [#tpu.dimension_semantics<parallel>], iteration_bounds = array<i64: 1>, scalar_prefetch = 0 : i64, scratch_operands = 0 : i64, tpu.core_type = #tpu.core_type<tc>, window_params = [{transform_indices = @transform_0, window_bounds = array<i64: 16, 25>}, {pipeline_mode = #tpu.pipeline_mode<synchronous>, transform_indices = @transform_1, window_bounds = array<i64: 25, 128>}, {pipeline_mode = #tpu.pipeline_mode<synchronous>, transform_indices = @transform_2, window_bounds = array<i64: 7, 128, 128>}, {pipeline_mode = #tpu.pipeline_mode<synchronous>, transform_indices = @transform_3, window_bounds = array<i64: 8, 128>}, {transform_indices = @transform_4, window_bounds = array<i64: 16, 128>}]} {
    %c0 = arith.constant 0 : index
    %c0_0 = arith.constant 0 : index
    %0 = vector.load %arg1[%c0, %c0_0] : memref<16x25xf32, #tpu.memory_space<vmem>>, vector<16x25xf32>
    %1 = arith.truncf %0 : vector<16x25xf32> to vector<16x25xbf16>
    %c0_1 = arith.constant 0 : index
    %c0_2 = arith.constant 0 : index
    %2 = vector.load %arg2[%c0_1, %c0_2] : memref<25x128xbf16, #tpu.memory_space<vmem>>, vector<25x128xbf16>
    %cst = arith.constant dense<0.000000e+00> : vector<16x128xf32>
    %3 = tpu.matmul %1, %2, %cst {dimension_numbers = #tpu.dot_dimension_numbers<[1], [0], [0], [1], [0, 0, 1, 1], [], []>} : vector<16x25xbf16>, vector<25x128xbf16>, vector<16x128xf32> -> vector<16x128xf32>
    %c0_3 = arith.constant 0 : index
    %c0_4 = arith.constant 0 : index
    %4 = vector.load %arg4[%c0_3, %c0_4] : memref<8x128xf32, #tpu.memory_space<vmem>>, vector<1x128xf32>
    %5 = vector.broadcast %4 : vector<1x128xf32> to vector<16x128xf32>
    %6 = arith.addf %3, %5 : vector<16x128xf32>
    %cst_5 = arith.constant 0.000000e+00 : f32
    %7 = vector.broadcast %cst_5 : f32 to vector<16x128xf32>
    %8 = arith.maximumf %6, %7 : vector<16x128xf32>
    %c0_6 = arith.constant 0 : index
    %c0_7 = arith.constant 0 : index
    %c0_8 = arith.constant 0 : index
    %9 = vector.load %arg3[%c0_6, %c0_7, %c0_8] : memref<7x128x128xbf16, #tpu.memory_space<vmem>>, vector<1x128x128xbf16>
    %10 = vector.shape_cast %9 : vector<1x128x128xbf16> to vector<128x128xbf16>
    %11 = arith.truncf %8 : vector<16x128xf32> to vector<16x128xbf16>
    %cst_9 = arith.constant dense<0.000000e+00> : vector<16x128xf32>
    %12 = tpu.matmul %11, %10, %cst_9 {dimension_numbers = #tpu.dot_dimension_numbers<[1], [0], [0], [1], [0, 0, 1, 1], [], []>} : vector<16x128xbf16>, vector<128x128xbf16>, vector<16x128xf32> -> vector<16x128xf32>
    %c1 = arith.constant 1 : index
    %c0_10 = arith.constant 0 : index
    %13 = vector.load %arg4[%c1, %c0_10] : memref<8x128xf32, #tpu.memory_space<vmem>>, vector<1x128xf32>
    %14 = vector.broadcast %13 : vector<1x128xf32> to vector<16x128xf32>
    %15 = arith.addf %12, %14 : vector<16x128xf32>
    %cst_11 = arith.constant 0.000000e+00 : f32
    %16 = vector.broadcast %cst_11 : f32 to vector<16x128xf32>
    %17 = arith.maximumf %15, %16 : vector<16x128xf32>
    %c1_12 = arith.constant 1 : index
    %c0_13 = arith.constant 0 : index
    %c0_14 = arith.constant 0 : index
    %18 = vector.load %arg3[%c1_12, %c0_13, %c0_14] : memref<7x128x128xbf16, #tpu.memory_space<vmem>>, vector<1x128x128xbf16>
    %19 = vector.shape_cast %18 : vector<1x128x128xbf16> to vector<128x128xbf16>
    %20 = arith.truncf %17 : vector<16x128xf32> to vector<16x128xbf16>
    %cst_15 = arith.constant dense<0.000000e+00> : vector<16x128xf32>
    %21 = tpu.matmul %20, %19, %cst_15 {dimension_numbers = #tpu.dot_dimension_numbers<[1], [0], [0], [1], [0, 0, 1, 1], [], []>} : vector<16x128xbf16>, vector<128x128xbf16>, vector<16x128xf32> -> vector<16x128xf32>
    %c2 = arith.constant 2 : index
    %c0_16 = arith.constant 0 : index
    %22 = vector.load %arg4[%c2, %c0_16] : memref<8x128xf32, #tpu.memory_space<vmem>>, vector<1x128xf32>
    %23 = vector.broadcast %22 : vector<1x128xf32> to vector<16x128xf32>
    %24 = arith.addf %21, %23 : vector<16x128xf32>
    %cst_17 = arith.constant 0.000000e+00 : f32
    %25 = vector.broadcast %cst_17 : f32 to vector<16x128xf32>
    %26 = arith.maximumf %24, %25 : vector<16x128xf32>
    %c2_18 = arith.constant 2 : index
    %c0_19 = arith.constant 0 : index
    %c0_20 = arith.constant 0 : index
    %27 = vector.load %arg3[%c2_18, %c0_19, %c0_20] : memref<7x128x128xbf16, #tpu.memory_space<vmem>>, vector<1x128x128xbf16>
    %28 = vector.shape_cast %27 : vector<1x128x128xbf16> to vector<128x128xbf16>
    %29 = arith.truncf %26 : vector<16x128xf32> to vector<16x128xbf16>
    %cst_21 = arith.constant dense<0.000000e+00> : vector<16x128xf32>
    %30 = tpu.matmul %29, %28, %cst_21 {dimension_numbers = #tpu.dot_dimension_numbers<[1], [0], [0], [1], [0, 0, 1, 1], [], []>} : vector<16x128xbf16>, vector<128x128xbf16>, vector<16x128xf32> -> vector<16x128xf32>
    %c3 = arith.constant 3 : index
    %c0_22 = arith.constant 0 : index
    %31 = vector.load %arg4[%c3, %c0_22] : memref<8x128xf32, #tpu.memory_space<vmem>>, vector<1x128xf32>
    %32 = vector.broadcast %31 : vector<1x128xf32> to vector<16x128xf32>
    %33 = arith.addf %30, %32 : vector<16x128xf32>
    %cst_23 = arith.constant 0.000000e+00 : f32
    %34 = vector.broadcast %cst_23 : f32 to vector<16x128xf32>
    %35 = arith.maximumf %33, %34 : vector<16x128xf32>
    %c3_24 = arith.constant 3 : index
    %c0_25 = arith.constant 0 : index
    %c0_26 = arith.constant 0 : index
    %36 = vector.load %arg3[%c3_24, %c0_25, %c0_26] : memref<7x128x128xbf16, #tpu.memory_space<vmem>>, vector<1x128x128xbf16>
    %37 = vector.shape_cast %36 : vector<1x128x128xbf16> to vector<128x128xbf16>
    %38 = arith.truncf %35 : vector<16x128xf32> to vector<16x128xbf16>
    %cst_27 = arith.constant dense<0.000000e+00> : vector<16x128xf32>
    %39 = tpu.matmul %38, %37, %cst_27 {dimension_numbers = #tpu.dot_dimension_numbers<[1], [0], [0], [1], [0, 0, 1, 1], [], []>} : vector<16x128xbf16>, vector<128x128xbf16>, vector<16x128xf32> -> vector<16x128xf32>
    %c4 = arith.constant 4 : index
    %c0_28 = arith.constant 0 : index
    %40 = vector.load %arg4[%c4, %c0_28] : memref<8x128xf32, #tpu.memory_space<vmem>>, vector<1x128xf32>
    %41 = vector.broadcast %40 : vector<1x128xf32> to vector<16x128xf32>
    %42 = arith.addf %39, %41 : vector<16x128xf32>
    %cst_29 = arith.constant 0.000000e+00 : f32
    %43 = vector.broadcast %cst_29 : f32 to vector<16x128xf32>
    %44 = arith.maximumf %42, %43 : vector<16x128xf32>
    %c4_30 = arith.constant 4 : index
    %c0_31 = arith.constant 0 : index
    %c0_32 = arith.constant 0 : index
    %45 = vector.load %arg3[%c4_30, %c0_31, %c0_32] : memref<7x128x128xbf16, #tpu.memory_space<vmem>>, vector<1x128x128xbf16>
    %46 = vector.shape_cast %45 : vector<1x128x128xbf16> to vector<128x128xbf16>
    %47 = arith.truncf %44 : vector<16x128xf32> to vector<16x128xbf16>
    %cst_33 = arith.constant dense<0.000000e+00> : vector<16x128xf32>
    %48 = tpu.matmul %47, %46, %cst_33 {dimension_numbers = #tpu.dot_dimension_numbers<[1], [0], [0], [1], [0, 0, 1, 1], [], []>} : vector<16x128xbf16>, vector<128x128xbf16>, vector<16x128xf32> -> vector<16x128xf32>
    %c5 = arith.constant 5 : index
    %c0_34 = arith.constant 0 : index
    %49 = vector.load %arg4[%c5, %c0_34] : memref<8x128xf32, #tpu.memory_space<vmem>>, vector<1x128xf32>
    %50 = vector.broadcast %49 : vector<1x128xf32> to vector<16x128xf32>
    %51 = arith.addf %48, %50 : vector<16x128xf32>
    %cst_35 = arith.constant 0.000000e+00 : f32
    %52 = vector.broadcast %cst_35 : f32 to vector<16x128xf32>
    %53 = arith.maximumf %51, %52 : vector<16x128xf32>
    %c5_36 = arith.constant 5 : index
    %c0_37 = arith.constant 0 : index
    %c0_38 = arith.constant 0 : index
    %54 = vector.load %arg3[%c5_36, %c0_37, %c0_38] : memref<7x128x128xbf16, #tpu.memory_space<vmem>>, vector<1x128x128xbf16>
    %55 = vector.shape_cast %54 : vector<1x128x128xbf16> to vector<128x128xbf16>
    %56 = arith.truncf %53 : vector<16x128xf32> to vector<16x128xbf16>
    %cst_39 = arith.constant dense<0.000000e+00> : vector<16x128xf32>
    %57 = tpu.matmul %56, %55, %cst_39 {dimension_numbers = #tpu.dot_dimension_numbers<[1], [0], [0], [1], [0, 0, 1, 1], [], []>} : vector<16x128xbf16>, vector<128x128xbf16>, vector<16x128xf32> -> vector<16x128xf32>
    %c6 = arith.constant 6 : index
    %c0_40 = arith.constant 0 : index
    %58 = vector.load %arg4[%c6, %c0_40] : memref<8x128xf32, #tpu.memory_space<vmem>>, vector<1x128xf32>
    %59 = vector.broadcast %58 : vector<1x128xf32> to vector<16x128xf32>
    %60 = arith.addf %57, %59 : vector<16x128xf32>
    %cst_41 = arith.constant 0.000000e+00 : f32
    %61 = vector.broadcast %cst_41 : f32 to vector<16x128xf32>
    %62 = arith.maximumf %60, %61 : vector<16x128xf32>
    %c6_42 = arith.constant 6 : index
    %c0_43 = arith.constant 0 : index
    %c0_44 = arith.constant 0 : index
    %63 = vector.load %arg3[%c6_42, %c0_43, %c0_44] : memref<7x128x128xbf16, #tpu.memory_space<vmem>>, vector<1x128x128xbf16>
    %64 = vector.shape_cast %63 : vector<1x128x128xbf16> to vector<128x128xbf16>
    %65 = arith.truncf %62 : vector<16x128xf32> to vector<16x128xbf16>
    %cst_45 = arith.constant dense<0.000000e+00> : vector<16x128xf32>
    %66 = tpu.matmul %65, %64, %cst_45 {dimension_numbers = #tpu.dot_dimension_numbers<[1], [0], [0], [1], [0, 0, 1, 1], [], []>} : vector<16x128xbf16>, vector<128x128xbf16>, vector<16x128xf32> -> vector<16x128xf32>
    %c7 = arith.constant 7 : index
    %c0_46 = arith.constant 0 : index
    %67 = vector.load %arg4[%c7, %c0_46] : memref<8x128xf32, #tpu.memory_space<vmem>>, vector<1x128xf32>
    %68 = vector.broadcast %67 : vector<1x128xf32> to vector<16x128xf32>
    %69 = arith.addf %66, %68 : vector<16x128xf32>
    %70 = arith.truncf %69 : vector<16x128xf32> to vector<16x128xbf16>
    %c0_47 = arith.constant 0 : index
    %c0_48 = arith.constant 0 : index
    %71 = vector.load %arg5[%c0_47, %c0_48] : memref<16x128xbf16, #tpu.memory_space<vmem>>, vector<16x128xbf16>
    tpu.vector_store %arg5[%c0_47, %c0_48], %70 {strides = array<i32>} : memref<16x128xbf16, #tpu.memory_space<vmem>>, vector<16x128xbf16>,
    return
  }
  func.func @transform_0(%arg0: i32) -> (i32, i32) {
    %c0_i32 = arith.constant 0 : i32
    %c0_i32_0 = arith.constant 0 : i32
    return %arg0, %c0_i32 : i32, i32
  }
  func.func @transform_1(%arg0: i32) -> (i32, i32) {
    %c0_i32 = arith.constant 0 : i32
    %c0_i32_0 = arith.constant 0 : i32
    %c0_i32_1 = arith.constant 0 : i32
    return %c0_i32, %c0_i32_0 : i32, i32
  }
  func.func @transform_2(%arg0: i32) -> (i32, i32, i32) {
    %c0_i32 = arith.constant 0 : i32
    %c0_i32_0 = arith.constant 0 : i32
    %c0_i32_1 = arith.constant 0 : i32
    %c0_i32_2 = arith.constant 0 : i32
    return %c0_i32, %c0_i32_0, %c0_i32_1 : i32, i32, i32
  }
  func.func @transform_3(%arg0: i32) -> (i32, i32) {
    %c0_i32 = arith.constant 0 : i32
    %c0_i32_0 = arith.constant 0 : i32
    %c0_i32_1 = arith.constant 0 : i32
    return %c0_i32, %c0_i32_0 : i32, i32
  }
  func.func @transform_4(%arg0: i32) -> (i32, i32) {
    %c0_i32 = arith.constant 0 : i32
    %c0_i32_0 = arith.constant 0 : i32
    return %arg0, %c0_i32 : i32, i32
  }
}

</mosaic_0001>

<llo_original>
// kernel: naive_nn_forward.1
$region0: #{naive_nn_forward.1}
  #allocation0 [shape = 'u32[]', space=smem, size = 0x4, offset = 0x4, fixed_abs, tag = 'smem constant byte address 0x4 - core index']
  #allocation1 [shape = 'u32[72,128]{1,0:T(1,128)}', space=vmem, size = 0x9000, scoped, tag = 'internal scratch']
  %s0 = inlined_call_operand.vmem [shape: f32[16,25], index: 0, kind: input, shape index: {}]
  %s1 = inlined_call_operand.vmem [shape: bf16[25,128], index: 1, kind: input, shape index: {}]
  %s2 = inlined_call_operand.hbm [shape: bf16[7,128,128], index: 2, kind: input, shape index: {}]
  %s3 = inlined_call_operand.vmem [shape: f32[8,128], index: 3, kind: input, shape index: {}]
  %s4 = inlined_call_operand.vmem [shape: bf16[16,128], index: 4, kind: output, shape index: {}]
  %s5 = sld [smem:[#allocation0]]
  $region30: #{naive_nn_forward.1} parent=0
    _
  %s7 = ssub.s32 1, %s5
  %s8 = scalar_select 0, %s7, %s5
  $region1: #{naive_nn_forward.1} parent=0
    #allocation2 [shape = 'u8[229376]{0}', space=vmem, size = 0x38000, scoped, tag = 'input window, operand 2, single buffered']
    #allocation3 [shape = 's32[1]{0}', space=sflag, size = 0x4, scoped, tag = 'scoped memory for naive_nn_forward.1']
    %9 = vsyncpa [#allocation3], 0
    // Predicated region
    $region2: #{naive_nn_forward.1} parent=1 // pred_check
      _
    $region3: #{naive_nn_forward.1} parent=1 // pred_check_branch
      %11 = sbr.rel (0) target = $region5
    $region4: #{naive_nn_forward.1} parent=1 // pred_region
      _
    $region5: #{naive_nn_forward.1} parent=1 // pred_fallthru
      _
    // Predicated region
    $region6: #{naive_nn_forward.1} parent=1 // pred_check
      _
    $region7: #{naive_nn_forward.1} parent=1 // pred_check_branch
      %13 = sbr.rel (0) target = $region9
    $region8: #{naive_nn_forward.1} parent=1 // pred_region
      _
    $region9: #{naive_nn_forward.1} parent=1 // pred_fallthru
      _
    // Predicated region
    $region10: #{naive_nn_forward.1} parent=1 // pred_check
      _
    $region11: #{naive_nn_forward.1} parent=1 // pred_check_branch
      %15 = sbr.rel (0) target = $region13
    $region12: #{naive_nn_forward.1} parent=1 // pred_region
      %17 = vsyncadd [#allocation3], 0
      %s18 = sshll.u32 %s2, 4
      %s19 = int_to_ptr.hbm [resolvable:$true] %s18
      %s20 = sshll.u32 [#allocation2], 4
      %s21 = int_to_ptr.vmem [resolvable:$true] %s20
      %26 = dma.hbm_to_vmem [thread:$0]  %s19, 7168, %s21, [#allocation3], 64, 64, 4
    $region13: #{naive_nn_forward.1} parent=1 // pred_fallthru
      _
    // Predicated region
    $region14: #{naive_nn_forward.1} parent=1 // pred_check
      _
    $region15: #{naive_nn_forward.1} parent=1 // pred_check_branch
      %28 = sbr.rel (0) target = $region17
    $region16: #{naive_nn_forward.1} parent=1 // pred_region
      _
    $region17: #{naive_nn_forward.1} parent=1 // pred_fallthru
      _
    // Predicated region
    $region18: #{naive_nn_forward.1} parent=1 // pred_check
      _
    $region19: #{naive_nn_forward.1} parent=1 // pred_check_branch
      %30 = sbr.rel (0) target = $region21
    $region20: #{naive_nn_forward.1} parent=1 // pred_region
      %32 = dma.done [#allocation3], 7168
    $region21: #{naive_nn_forward.1} parent=1 // pred_fallthru
      _
    %v34 = vld [vmem:[%s0] sm:$0xff]
    %v35 = vld [vmem:[%s0 + $0x8] sm:$0xff]
    %v36 = vpack.c.bf16 %v35, %v34
    %v37 = vld [vmem:[%s1] sm:$0xf]
    %v38 = vld [vmem:[%s1 + $0x4] sm:$0xf]
    %v39 = vld [vmem:[%s1 + $0x8] sm:$0xf]
    %v40 = vld [vmem:[%s1 + $0xc] sm:$0x1]
    %v41 = vld [vmem:[%s3] sm:$0x1]
    %v42 = vperm.slane %v41, 0
    %v47 = vunpack.c.l.b16 %v37
    %v48 = vunpack.c.l.b16 %v38
    %v49 = vunpack.c.l.b16 %v39
    %v50 = vunpack.c.l.b16 %v40
    %v51 = vpack.c.b16 %v48, %v47
    %v52 = vpack.c.b16 %v50, %v49
    %vm54 = vcmask 203776
    %v56 = vsel %vm54, %v36, 0
    %vm58 = vcmask 1043456
    %vm59 = vcmask 1044480
    %v60 = vsel %vm58, 4294967295, 65535
    %v61 = vsel %vm59, %v60, 0
    %v63 = vand.u32 %v52, %v61
    %65 = vmatpush.bf16.msra.mxu0 0
    %66 = vmatpush.bf16.msra.mxu0 0
    %67 = vmatpush.bf16.msra.mxu0 0
    %68 = vmatpush.bf16.msra.mxu0 0
    %69 = vmatpush.bf16.msra.mxu0 0
    %70 = vmatpush.bf16.msra.mxu0 0
    %71 = vmatpush.bf16.msra.mxu0 %v63
    %72 = vmatpush.bf16.msra.mxu0 %v51
    %73 = vmatmul.bf16.gmra.mxu0 %v56
    %v74 = vpop.f32.mrf.mxu0
    %v75 = vadd.f32 %v42, %v74
    %v76 = vpop.f32.mrf.mxu0
    %v77 = vadd.f32 %v42, %v76
    %78 = vdwg.mxu0
    %v79 = vmax.f32 %v75, 0.0
    %v80 = vmax.f32 %v77, 0.0
    %v81 = vld [vmem:[#allocation2] sm:$0xf]
    %v82 = vld [vmem:[#allocation2 + $0x4] sm:$0xf]
    %v83 = vld [vmem:[#allocation2 + $0x8] sm:$0xf]
    %v84 = vld [vmem:[#allocation2 + $0xc] sm:$0xf]
    %v85 = vld [vmem:[#allocation2 + $0x10] sm:$0xf]
    %v86 = vld [vmem:[#allocation2 + $0x14] sm:$0xf]
    %v87 = vld [vmem:[#allocation2 + $0x18] sm:$0xf]
    %v88 = vld [vmem:[#allocation2 + $0x1c] sm:$0xf]
    %v89 = vld [vmem:[#allocation2 + $0x20] sm:$0xf]
    %v90 = vld [vmem:[#allocation2 + $0x24] sm:$0xf]
    %v91 = vld [vmem:[#allocation2 + $0x28] sm:$0xf]
    %v92 = vld [vmem:[#allocation2 + $0x2c] sm:$0xf]
    %v93 = vld [vmem:[#allocation2 + $0x30] sm:$0xf]
    %v94 = vld [vmem:[#allocation2 + $0x34] sm:$0xf]
    %v95 = vld [vmem:[#allocation2 + $0x38] sm:$0xf]
    %v96 = vld [vmem:[#allocation2 + $0x3c] sm:$0xf]
    %v97 = vpack.c.bf16 %v80, %v79
    %v98 = vld [vmem:[%s3 + $0x1] sm:$0x1]
    %v99 = vperm.slane %v98, 0
    %v116 = vunpack.c.l.b16 %v81
    %v117 = vunpack.c.l.b16 %v82
    %v118 = vunpack.c.l.b16 %v83
    %v119 = vunpack.c.l.b16 %v84
    %v120 = vunpack.c.l.b16 %v85
    %v121 = vunpack.c.l.b16 %v86
    %v122 = vunpack.c.l.b16 %v87
    %v123 = vunpack.c.l.b16 %v88
    %v124 = vunpack.c.l.b16 %v89
    %v125 = vunpack.c.l.b16 %v90
    %v126 = vunpack.c.l.b16 %v91
    %v127 = vunpack.c.l.b16 %v92
    %v128 = vunpack.c.l.b16 %v93
    %v129 = vunpack.c.l.b16 %v94
    %v130 = vunpack.c.l.b16 %v95
    %v131 = vunpack.c.l.b16 %v96
    %v132 = vpack.c.b16 %v117, %v116
    %v133 = vpack.c.b16 %v119, %v118
    %v134 = vpack.c.b16 %v121, %v120
    %v135 = vpack.c.b16 %v123, %v122
    %v136 = vpack.c.b16 %v125, %v124
    %v137 = vpack.c.b16 %v127, %v126
    %v138 = vpack.c.b16 %v129, %v128
    %v139 = vpack.c.b16 %v131, %v130
    %148 = vmatpush.bf16.msra.mxu0 %v139
    %149 = vmatpush.bf16.msra.mxu0 %v138
    %150 = vmatpush.bf16.msra.mxu0 %v137
    %151 = vmatpush.bf16.msra.mxu0 %v136
    %152 = vmatpush.bf16.msra.mxu0 %v135
    %153 = vmatpush.bf16.msra.mxu0 %v134
    %154 = vmatpush.bf16.msra.mxu0 %v133
    %155 = vmatpush.bf16.msra.mxu0 %v132
    %156 = vmatmul.bf16.gmra.mxu0 %v97
    %v157 = vpop.f32.mrf.mxu0
    %v158 = vadd.f32 %v99, %v157
    %v159 = vpop.f32.mrf.mxu0
    %v160 = vadd.f32 %v99, %v159
    %161 = vdwg.mxu0
    %v162 = vmax.f32 %v158, 0.0
    %v163 = vmax.f32 %v160, 0.0
    %s164 = scalar_lea.vmem [#allocation2], 64
    %v165 = vld [vmem:[%s164] sm:$0xf]
    %v166 = vld [vmem:[%s164 + $0x4] sm:$0xf]
    %v167 = vld [vmem:[%s164 + $0x8] sm:$0xf]
    %v168 = vld [vmem:[%s164 + $0xc] sm:$0xf]
    %v169 = vld [vmem:[%s164 + $0x10] sm:$0xf]
    %v170 = vld [vmem:[%s164 + $0x14] sm:$0xf]
    %v171 = vld [vmem:[%s164 + $0x18] sm:$0xf]
    %v172 = vld [vmem:[%s164 + $0x1c] sm:$0xf]
    %v173 = vld [vmem:[%s164 + $0x20] sm:$0xf]
    %v174 = vld [vmem:[%s164 + $0x24] sm:$0xf]
    %v175 = vld [vmem:[%s164 + $0x28] sm:$0xf]
    %v176 = vld [vmem:[%s164 + $0x2c] sm:$0xf]
    %v177 = vld [vmem:[%s164 + $0x30] sm:$0xf]
    %v178 = vld [vmem:[%s164 + $0x34] sm:$0xf]
    %v179 = vld [vmem:[%s164 + $0x38] sm:$0xf]
    %v180 = vld [vmem:[%s164 + $0x3c] sm:$0xf]
    %v181 = vpack.c.bf16 %v163, %v162
    %v182 = vld [vmem:[%s3 + $0x2] sm:$0x1]
    %v183 = vperm.slane %v182, 0
    %v200 = vunpack.c.l.b16 %v165
    %v201 = vunpack.c.l.b16 %v166
    %v202 = vunpack.c.l.b16 %v167
    %v203 = vunpack.c.l.b16 %v168
    %v204 = vunpack.c.l.b16 %v169
    %v205 = vunpack.c.l.b16 %v170
    %v206 = vunpack.c.l.b16 %v171
    %v207 = vunpack.c.l.b16 %v172
    %v208 = vunpack.c.l.b16 %v173
    %v209 = vunpack.c.l.b16 %v174
    %v210 = vunpack.c.l.b16 %v175
    %v211 = vunpack.c.l.b16 %v176
    %v212 = vunpack.c.l.b16 %v177
    %v213 = vunpack.c.l.b16 %v178
    %v214 = vunpack.c.l.b16 %v179
    %v215 = vunpack.c.l.b16 %v180
    %v216 = vpack.c.b16 %v201, %v200
    %v217 = vpack.c.b16 %v203, %v202
    %v218 = vpack.c.b16 %v205, %v204
    %v219 = vpack.c.b16 %v207, %v206
    %v220 = vpack.c.b16 %v209, %v208
    %v221 = vpack.c.b16 %v211, %v210
    %v222 = vpack.c.b16 %v213, %v212
    %v223 = vpack.c.b16 %v215, %v214
    %232 = vmatpush.bf16.msra.mxu0 %v223
    %233 = vmatpush.bf16.msra.mxu0 %v222
    %234 = vmatpush.bf16.msra.mxu0 %v221
    %235 = vmatpush.bf16.msra.mxu0 %v220
    %236 = vmatpush.bf16.msra.mxu0 %v219
    %237 = vmatpush.bf16.msra.mxu0 %v218
    %238 = vmatpush.bf16.msra.mxu0 %v217
    %239 = vmatpush.bf16.msra.mxu0 %v216
    %240 = vmatmul.bf16.gmra.mxu0 %v181
    %v241 = vpop.f32.mrf.mxu0
    %v242 = vadd.f32 %v183, %v241
    %v243 = vpop.f32.mrf.mxu0
    %v244 = vadd.f32 %v183, %v243
    %245 = vdwg.mxu0
    %v246 = vmax.f32 %v242, 0.0
    %v247 = vmax.f32 %v244, 0.0
    %s248 = scalar_lea.vmem [#allocation2], 128
    %v249 = vld [vmem:[%s248] sm:$0xf]
    %v250 = vld [vmem:[%s248 + $0x4] sm:$0xf]
    %v251 = vld [vmem:[%s248 + $0x8] sm:$0xf]
    %v252 = vld [vmem:[%s248 + $0xc] sm:$0xf]
    %v253 = vld [vmem:[%s248 + $0x10] sm:$0xf]
    %v254 = vld [vmem:[%s248 + $0x14] sm:$0xf]
    %v255 = vld [vmem:[%s248 + $0x18] sm:$0xf]
    %v256 = vld [vmem:[%s248 + $0x1c] sm:$0xf]
    %v257 = vld [vmem:[%s248 + $0x20] sm:$0xf]
    %v258 = vld [vmem:[%s248 + $0x24] sm:$0xf]
    %v259 = vld [vmem:[%s248 + $0x28] sm:$0xf]
    %v260 = vld [vmem:[%s248 + $0x2c] sm:$0xf]
    %v261 = vld [vmem:[%s248 + $0x30] sm:$0xf]
    %v262 = vld [vmem:[%s248 + $0x34] sm:$0xf]
    %v263 = vld [vmem:[%s248 + $0x38] sm:$0xf]
    %v264 = vld [vmem:[%s248 + $0x3c] sm:$0xf]
    %v265 = vpack.c.bf16 %v247, %v246
    %v266 = vld [vmem:[%s3 + $0x3] sm:$0x1]
    %v267 = vperm.slane %v266, 0
    %v284 = vunpack.c.l.b16 %v249
    %v285 = vunpack.c.l.b16 %v250
    %v286 = vunpack.c.l.b16 %v251
    %v287 = vunpack.c.l.b16 %v252
    %v288 = vunpack.c.l.b16 %v253
    %v289 = vunpack.c.l.b16 %v254
    %v290 = vunpack.c.l.b16 %v255
    %v291 = vunpack.c.l.b16 %v256
    %v292 = vunpack.c.l.b16 %v257
    %v293 = vunpack.c.l.b16 %v258
    %v294 = vunpack.c.l.b16 %v259
    %v295 = vunpack.c.l.b16 %v260
    %v296 = vunpack.c.l.b16 %v261
    %v297 = vunpack.c.l.b16 %v262
    %v298 = vunpack.c.l.b16 %v263
    %v299 = vunpack.c.l.b16 %v264
    %v300 = vpack.c.b16 %v285, %v284
    %v301 = vpack.c.b16 %v287, %v286
    %v302 = vpack.c.b16 %v289, %v288
    %v303 = vpack.c.b16 %v291, %v290
    %v304 = vpack.c.b16 %v293, %v292
    %v305 = vpack.c.b16 %v295, %v294
    %v306 = vpack.c.b16 %v297, %v296
    %v307 = vpack.c.b16 %v299, %v298
    %316 = vmatpush.bf16.msra.mxu0 %v307
    %317 = vmatpush.bf16.msra.mxu0 %v306
    %318 = vmatpush.bf16.msra.mxu0 %v305
    %319 = vmatpush.bf16.msra.mxu0 %v304
    %320 = vmatpush.bf16.msra.mxu0 %v303
    %321 = vmatpush.bf16.msra.mxu0 %v302
    %322 = vmatpush.bf16.msra.mxu0 %v301
    %323 = vmatpush.bf16.msra.mxu0 %v300
    %324 = vmatmul.bf16.gmra.mxu0 %v265
    %v325 = vpop.f32.mrf.mxu0
    %v326 = vadd.f32 %v267, %v325
    %v327 = vpop.f32.mrf.mxu0
    %v328 = vadd.f32 %v267, %v327
    %329 = vdwg.mxu0
    %v330 = vmax.f32 %v326, 0.0
    %v331 = vmax.f32 %v328, 0.0
    %s332 = scalar_lea.vmem [#allocation2], 192
    %v333 = vld [vmem:[%s332] sm:$0xf]
    %v334 = vld [vmem:[%s332 + $0x4] sm:$0xf]
    %v335 = vld [vmem:[%s332 + $0x8] sm:$0xf]
    %v336 = vld [vmem:[%s332 + $0xc] sm:$0xf]
    %v337 = vld [vmem:[%s332 + $0x10] sm:$0xf]
    %v338 = vld [vmem:[%s332 + $0x14] sm:$0xf]
    %v339 = vld [vmem:[%s332 + $0x18] sm:$0xf]
    %v340 = vld [vmem:[%s332 + $0x1c] sm:$0xf]
    %v341 = vld [vmem:[%s332 + $0x20] sm:$0xf]
    %v342 = vld [vmem:[%s332 + $0x24] sm:$0xf]
    %v343 = vld [vmem:[%s332 + $0x28] sm:$0xf]
    %v344 = vld [vmem:[%s332 + $0x2c] sm:$0xf]
    %v345 = vld [vmem:[%s332 + $0x30] sm:$0xf]
    %v346 = vld [vmem:[%s332 + $0x34] sm:$0xf]
    %v347 = vld [vmem:[%s332 + $0x38] sm:$0xf]
    %v348 = vld [vmem:[%s332 + $0x3c] sm:$0xf]
    %v349 = vpack.c.bf16 %v331, %v330
    %v350 = vld [vmem:[%s3 + $0x4] sm:$0x1]
    %v351 = vperm.slane %v350, 0
    %v368 = vunpack.c.l.b16 %v333
    %v369 = vunpack.c.l.b16 %v334
    %v370 = vunpack.c.l.b16 %v335
    %v371 = vunpack.c.l.b16 %v336
    %v372 = vunpack.c.l.b16 %v337
    %v373 = vunpack.c.l.b16 %v338
    %v374 = vunpack.c.l.b16 %v339
    %v375 = vunpack.c.l.b16 %v340
    %v376 = vunpack.c.l.b16 %v341
    %v377 = vunpack.c.l.b16 %v342
    %v378 = vunpack.c.l.b16 %v343
    %v379 = vunpack.c.l.b16 %v344
    %v380 = vunpack.c.l.b16 %v345
    %v381 = vunpack.c.l.b16 %v346
    %v382 = vunpack.c.l.b16 %v347
    %v383 = vunpack.c.l.b16 %v348
    %v384 = vpack.c.b16 %v369, %v368
    %v385 = vpack.c.b16 %v371, %v370
    %v386 = vpack.c.b16 %v373, %v372
    %v387 = vpack.c.b16 %v375, %v374
    %v388 = vpack.c.b16 %v377, %v376
    %v389 = vpack.c.b16 %v379, %v378
    %v390 = vpack.c.b16 %v381, %v380
    %v391 = vpack.c.b16 %v383, %v382
    %400 = vmatpush.bf16.msra.mxu0 %v391
    %401 = vmatpush.bf16.msra.mxu0 %v390
    %402 = vmatpush.bf16.msra.mxu0 %v389
    %403 = vmatpush.bf16.msra.mxu0 %v388
    %404 = vmatpush.bf16.msra.mxu0 %v387
    %405 = vmatpush.bf16.msra.mxu0 %v386
    %406 = vmatpush.bf16.msra.mxu0 %v385
    %407 = vmatpush.bf16.msra.mxu0 %v384
    %408 = vmatmul.bf16.gmra.mxu0 %v349
    %v409 = vpop.f32.mrf.mxu0
    %v410 = vadd.f32 %v351, %v409
    %v411 = vpop.f32.mrf.mxu0
    %v412 = vadd.f32 %v351, %v411
    %413 = vdwg.mxu0
    %v414 = vmax.f32 %v410, 0.0
    %v415 = vmax.f32 %v412, 0.0
    %s416 = scalar_lea.vmem [#allocation2], 256
    %v417 = vld [vmem:[%s416] sm:$0xf]
    %v418 = vld [vmem:[%s416 + $0x4] sm:$0xf]
    %v419 = vld [vmem:[%s416 + $0x8] sm:$0xf]
    %v420 = vld [vmem:[%s416 + $0xc] sm:$0xf]
    %v421 = vld [vmem:[%s416 + $0x10] sm:$0xf]
    %v422 = vld [vmem:[%s416 + $0x14] sm:$0xf]
    %v423 = vld [vmem:[%s416 + $0x18] sm:$0xf]
    %v424 = vld [vmem:[%s416 + $0x1c] sm:$0xf]
    %v425 = vld [vmem:[%s416 + $0x20] sm:$0xf]
    %v426 = vld [vmem:[%s416 + $0x24] sm:$0xf]
    %v427 = vld [vmem:[%s416 + $0x28] sm:$0xf]
    %v428 = vld [vmem:[%s416 + $0x2c] sm:$0xf]
    %v429 = vld [vmem:[%s416 + $0x30] sm:$0xf]
    %v430 = vld [vmem:[%s416 + $0x34] sm:$0xf]
    %v431 = vld [vmem:[%s416 + $0x38] sm:$0xf]
    %v432 = vld [vmem:[%s416 + $0x3c] sm:$0xf]
    %v433 = vpack.c.bf16 %v415, %v414
    %v434 = vld [vmem:[%s3 + $0x5] sm:$0x1]
    %v435 = vperm.slane %v434, 0
    %v452 = vunpack.c.l.b16 %v417
    %v453 = vunpack.c.l.b16 %v418
    %v454 = vunpack.c.l.b16 %v419
    %v455 = vunpack.c.l.b16 %v420
    %v456 = vunpack.c.l.b16 %v421
    %v457 = vunpack.c.l.b16 %v422
    %v458 = vunpack.c.l.b16 %v423
    %v459 = vunpack.c.l.b16 %v424
    %v460 = vunpack.c.l.b16 %v425
    %v461 = vunpack.c.l.b16 %v426
    %v462 = vunpack.c.l.b16 %v427
    %v463 = vunpack.c.l.b16 %v428
    %v464 = vunpack.c.l.b16 %v429
    %v465 = vunpack.c.l.b16 %v430
    %v466 = vunpack.c.l.b16 %v431
    %v467 = vunpack.c.l.b16 %v432
    %v468 = vpack.c.b16 %v453, %v452
    %v469 = vpack.c.b16 %v455, %v454
    %v470 = vpack.c.b16 %v457, %v456
    %v471 = vpack.c.b16 %v459, %v458
    %v472 = vpack.c.b16 %v461, %v460
    %v473 = vpack.c.b16 %v463, %v462
    %v474 = vpack.c.b16 %v465, %v464
    %v475 = vpack.c.b16 %v467, %v466
    %484 = vmatpush.bf16.msra.mxu0 %v475
    %485 = vmatpush.bf16.msra.mxu0 %v474
    %486 = vmatpush.bf16.msra.mxu0 %v473
    %487 = vmatpush.bf16.msra.mxu0 %v472
    %488 = vmatpush.bf16.msra.mxu0 %v471
    %489 = vmatpush.bf16.msra.mxu0 %v470
    %490 = vmatpush.bf16.msra.mxu0 %v469
    %491 = vmatpush.bf16.msra.mxu0 %v468
    %492 = vmatmul.bf16.gmra.mxu0 %v433
    %v493 = vpop.f32.mrf.mxu0
    %v494 = vadd.f32 %v435, %v493
    %v495 = vpop.f32.mrf.mxu0
    %v496 = vadd.f32 %v435, %v495
    %497 = vdwg.mxu0
    %v498 = vmax.f32 %v494, 0.0
    %v499 = vmax.f32 %v496, 0.0
    %s500 = scalar_lea.vmem [#allocation2], 320
    %v501 = vld [vmem:[%s500] sm:$0xf]
    %v502 = vld [vmem:[%s500 + $0x4] sm:$0xf]
    %v503 = vld [vmem:[%s500 + $0x8] sm:$0xf]
    %v504 = vld [vmem:[%s500 + $0xc] sm:$0xf]
    %v505 = vld [vmem:[%s500 + $0x10] sm:$0xf]
    %v506 = vld [vmem:[%s500 + $0x14] sm:$0xf]
    %v507 = vld [vmem:[%s500 + $0x18] sm:$0xf]
    %v508 = vld [vmem:[%s500 + $0x1c] sm:$0xf]
    %v509 = vld [vmem:[%s500 + $0x20] sm:$0xf]
    %v510 = vld [vmem:[%s500 + $0x24] sm:$0xf]
    %v511 = vld [vmem:[%s500 + $0x28] sm:$0xf]
    %v512 = vld [vmem:[%s500 + $0x2c] sm:$0xf]
    %v513 = vld [vmem:[%s500 + $0x30] sm:$0xf]
    %v514 = vld [vmem:[%s500 + $0x34] sm:$0xf]
    %v515 = vld [vmem:[%s500 + $0x38] sm:$0xf]
    %v516 = vld [vmem:[%s500 + $0x3c] sm:$0xf]
    %v517 = vpack.c.bf16 %v499, %v498
    %v518 = vld [vmem:[%s3 + $0x6] sm:$0x1]
    %v519 = vperm.slane %v518, 0
    %v536 = vunpack.c.l.b16 %v501
    %v537 = vunpack.c.l.b16 %v502
    %v538 = vunpack.c.l.b16 %v503
    %v539 = vunpack.c.l.b16 %v504
    %v540 = vunpack.c.l.b16 %v505
    %v541 = vunpack.c.l.b16 %v506
    %v542 = vunpack.c.l.b16 %v507
    %v543 = vunpack.c.l.b16 %v508
    %v544 = vunpack.c.l.b16 %v509
    %v545 = vunpack.c.l.b16 %v510
    %v546 = vunpack.c.l.b16 %v511
    %v547 = vunpack.c.l.b16 %v512
    %v548 = vunpack.c.l.b16 %v513
    %v549 = vunpack.c.l.b16 %v514
    %v550 = vunpack.c.l.b16 %v515
    %v551 = vunpack.c.l.b16 %v516
    %v552 = vpack.c.b16 %v537, %v536
    %v553 = vpack.c.b16 %v539, %v538
    %v554 = vpack.c.b16 %v541, %v540
    %v555 = vpack.c.b16 %v543, %v542
    %v556 = vpack.c.b16 %v545, %v544
    %v557 = vpack.c.b16 %v547, %v546
    %v558 = vpack.c.b16 %v549, %v548
    %v559 = vpack.c.b16 %v551, %v550
    %568 = vmatpush.bf16.msra.mxu0 %v559
    %569 = vmatpush.bf16.msra.mxu0 %v558
    %570 = vmatpush.bf16.msra.mxu0 %v557
    %571 = vmatpush.bf16.msra.mxu0 %v556
    %572 = vmatpush.bf16.msra.mxu0 %v555
    %573 = vmatpush.bf16.msra.mxu0 %v554
    %574 = vmatpush.bf16.msra.mxu0 %v553
    %575 = vmatpush.bf16.msra.mxu0 %v552
    %576 = vmatmul.bf16.gmra.mxu0 %v517
    %v577 = vpop.f32.mrf.mxu0
    %v578 = vadd.f32 %v519, %v577
    %v579 = vpop.f32.mrf.mxu0
    %v580 = vadd.f32 %v519, %v579
    %581 = vdwg.mxu0
    %v582 = vmax.f32 %v578, 0.0
    %v583 = vmax.f32 %v580, 0.0
    %s584 = scalar_lea.vmem [#allocation2], 384
    %v585 = vld [vmem:[%s584] sm:$0xf]
    %v586 = vld [vmem:[%s584 + $0x4] sm:$0xf]
    %v587 = vld [vmem:[%s584 + $0x8] sm:$0xf]
    %v588 = vld [vmem:[%s584 + $0xc] sm:$0xf]
    %v589 = vld [vmem:[%s584 + $0x10] sm:$0xf]
    %v590 = vld [vmem:[%s584 + $0x14] sm:$0xf]
    %v591 = vld [vmem:[%s584 + $0x18] sm:$0xf]
    %v592 = vld [vmem:[%s584 + $0x1c] sm:$0xf]
    %v593 = vld [vmem:[%s584 + $0x20] sm:$0xf]
    %v594 = vld [vmem:[%s584 + $0x24] sm:$0xf]
    %v595 = vld [vmem:[%s584 + $0x28] sm:$0xf]
    %v596 = vld [vmem:[%s584 + $0x2c] sm:$0xf]
    %v597 = vld [vmem:[%s584 + $0x30] sm:$0xf]
    %v598 = vld [vmem:[%s584 + $0x34] sm:$0xf]
    %v599 = vld [vmem:[%s584 + $0x38] sm:$0xf]
    %v600 = vld [vmem:[%s584 + $0x3c] sm:$0xf]
    %v601 = vpack.c.bf16 %v583, %v582
    %v602 = vld [vmem:[%s3 + $0x7] sm:$0x1]
    %v603 = vperm.slane %v602, 0
    %v620 = vunpack.c.l.b16 %v585
    %v621 = vunpack.c.l.b16 %v586
    %v622 = vunpack.c.l.b16 %v587
    %v623 = vunpack.c.l.b16 %v588
    %v624 = vunpack.c.l.b16 %v589
    %v625 = vunpack.c.l.b16 %v590
    %v626 = vunpack.c.l.b16 %v591
    %v627 = vunpack.c.l.b16 %v592
    %v628 = vunpack.c.l.b16 %v593
    %v629 = vunpack.c.l.b16 %v594
    %v630 = vunpack.c.l.b16 %v595
    %v631 = vunpack.c.l.b16 %v596
    %v632 = vunpack.c.l.b16 %v597
    %v633 = vunpack.c.l.b16 %v598
    %v634 = vunpack.c.l.b16 %v599
    %v635 = vunpack.c.l.b16 %v600
    %v636 = vpack.c.b16 %v621, %v620
    %v637 = vpack.c.b16 %v623, %v622
    %v638 = vpack.c.b16 %v625, %v624
    %v639 = vpack.c.b16 %v627, %v626
    %v640 = vpack.c.b16 %v629, %v628
    %v641 = vpack.c.b16 %v631, %v630
    %v642 = vpack.c.b16 %v633, %v632
    %v643 = vpack.c.b16 %v635, %v634
    %652 = vmatpush.bf16.msra.mxu0 %v643
    %653 = vmatpush.bf16.msra.mxu0 %v642
    %654 = vmatpush.bf16.msra.mxu0 %v641
    %655 = vmatpush.bf16.msra.mxu0 %v640
    %656 = vmatpush.bf16.msra.mxu0 %v639
    %657 = vmatpush.bf16.msra.mxu0 %v638
    %658 = vmatpush.bf16.msra.mxu0 %v637
    %659 = vmatpush.bf16.msra.mxu0 %v636
    %660 = vmatmul.bf16.gmra.mxu0 %v601
    %v661 = vpop.f32.mrf.mxu0
    %v662 = vadd.f32 %v603, %v661
    %v663 = vpop.f32.mrf.mxu0
    %v664 = vadd.f32 %v603, %v663
    %665 = vdwg.mxu0
    %v666 = vpack.c.bf16 %v662, %v662
    %v667 = vpack.c.bf16 %v664, %v664
    %668 = vst [vmem:[%s4] sm:$0xf] %v666
    %669 = vst [vmem:[%s4 + $0x4] sm:$0xf] %v667
    // Predicated region
    $region22: #{naive_nn_forward.1} parent=1 // pred_check
      _
    $region23: #{naive_nn_forward.1} parent=1 // pred_check_branch
      %671 = sbr.rel (0) target = $region25
    $region24: #{naive_nn_forward.1} parent=1 // pred_region
      _
    $region25: #{naive_nn_forward.1} parent=1 // pred_fallthru
      _
    // Predicated region
    $region26: #{naive_nn_forward.1} parent=1 // pred_check
      _
    $region27: #{naive_nn_forward.1} parent=1 // pred_check_branch
      %673 = sbr.rel (0) target = $region29
    $region28: #{naive_nn_forward.1} parent=1 // pred_region
      _
    $region29: #{naive_nn_forward.1} parent=1 // pred_fallthru
      _
    %674 = vsyncpa [#allocation3], 1

</llo_original>
